<compile_context>
chip_gen: v5e
topology: v5e:2x2
jax: 0.10.0
libtpu: 0.0.40
codegen_flags: <defaults>
</compile_context>

<pallas_src>
import jax
import jax.numpy as jnp
from jax.experimental import pallas as pl
from jax.experimental.pallas import tpu as pltpu


def _round_up(x, m):
    return (x + m - 1) // m * m


def _mlp2_kernel(x_ref, w1_ref, b1_ref, w2_ref, b2_ref, o_ref):
    # Fused hot path: matmul -> bias -> tanh -> matmul -> bias, all in VMEM.
    x = x_ref[...]
    h = jnp.tanh(
        jnp.dot(x, w1_ref[...], preferred_element_type=jnp.float32) + b1_ref[...]
    )
    y = (
        jnp.dot(h.astype(w2_ref.dtype), w2_ref[...],
                preferred_element_type=jnp.float32)
        + b2_ref[...]
    )
    o_ref[...] = y.astype(o_ref.dtype)


def _vmem_tile_bytes(shape, dtype):
    """VMEM footprint of a tile: last dim padded to 128 lanes; second-to-last
    padded to the dtype's sublane packing (8 for f32, 16 for bf16, ...)."""
    itemsize = jnp.dtype(dtype).itemsize
    sublanes = max(8, 32 // itemsize)
    dims = list(shape)
    dims[-1] = _round_up(dims[-1], 128)
    if len(dims) >= 2:
        dims[-2] = _round_up(dims[-2], sublanes)
    n = 1
    for d in dims:
        n *= d
    return n * itemsize


def _pick_tile_b(B, max_tile_b, min_blocks=2):
    """Rows per grid step: <= max_tile_b, >= min_blocks blocks when B allows
    (keeps both v7x TensorCores fed), ragged-block padding <= 7 rows."""
    n_blocks = max(pl.cdiv(B, max_tile_b), min(min_blocks, pl.cdiv(B, 8)))
    tile_b = _round_up(pl.cdiv(B, n_blocks), 8)
    return max(tile_b, 8)


def multi_nn_1layer_net(inputs, params, *, max_tile_b=4096):
    """inputs = (nearest_neibours, Na_data); only nearest_neibours is used."""
    nearest_neibours, _na_data = inputs  # Na_data deliberately unused (matches PyTorch)
    w1, b1, w2, b2 = params
    b1 = b1.reshape(1, -1)
    b2 = b2.reshape(1, -1)

    x = nearest_neibours
    B, D = x.shape
    H = w1.shape[1]
    OUT = w2.shape[1]
    out_dtype = x.dtype
    itemsize = jnp.dtype(x.dtype).itemsize

    # ---- batch tiling (Pallas double-buffers, handles ragged last block) ----
    tile_b = _pick_tile_b(B, max_tile_b)
    grid = (pl.cdiv(B, tile_b),)

    x_spec = pl.BlockSpec((tile_b, D), lambda i: (i, 0))
    # Weights/biases: constant index_map -> fetched once, stay VMEM-resident.
    w1_spec = pl.BlockSpec((D, H), lambda i: (0, 0))
    b1_spec = pl.BlockSpec((1, H), lambda i: (0, 0))
    w2_spec = pl.BlockSpec((H, OUT), lambda i: (0, 0))
    b2_spec = pl.BlockSpec((1, OUT), lambda i: (0, 0))
    # Output last dim = full OUT extent (allowed), no HBM padding.
    out_spec = pl.BlockSpec((tile_b, OUT), lambda i: (i, 0))

    # ---- VMEM budget with lane/sublane-padded footprints ---------------------
    vmem_need = (
        2 * _vmem_tile_bytes((tile_b, D), x.dtype)          # double-buffered x
        + 2 * _vmem_tile_bytes((tile_b, OUT), out_dtype)     # double-buffered out
        + _vmem_tile_bytes((D, H), w1.dtype)
        + _vmem_tile_bytes((1, H), b1.dtype)
        + _vmem_tile_bytes((H, OUT), w2.dtype)
        + _vmem_tile_bytes((1, OUT), b2.dtype)
        + _vmem_tile_bytes((tile_b, H), jnp.float32)         # tanh intermediate
        + _vmem_tile_bytes((tile_b, OUT), jnp.float32)       # 2nd matmul accum
    )
    try:
        vmem_cap = int(pltpu.get_tpu_info().vmem_capacity_bytes)
    except Exception:
        vmem_cap = 64 * 1024 * 1024  # conservative (v7x per-TC physical VMEM)
    vmem_limit = int(min(max(2 * vmem_need, 4 * 1024 * 1024), vmem_cap // 2))

    # Honest (un-padded) traffic/flops hint for XLA scheduling.
    param_bytes = (
        w1.size * jnp.dtype(w1.dtype).itemsize
        + b1.size * jnp.dtype(b1.dtype).itemsize
        + w2.size * jnp.dtype(w2.dtype).itemsize
        + b2.size * jnp.dtype(b2.dtype).itemsize
    )
    cost = pl.CostEstimate(
        flops=2 * B * (D * H + H * OUT),
        transcendentals=B * H,
        bytes_accessed=B * D * itemsize
        + B * OUT * jnp.dtype(out_dtype).itemsize
        + param_bytes,
    )

    out = pl.pallas_call(
        _mlp2_kernel,
        out_shape=jax.ShapeDtypeStruct((B, OUT), out_dtype),
        grid=grid,
        in_specs=[x_spec, w1_spec, b1_spec, w2_spec, b2_spec],
        out_specs=out_spec,
        compiler_params=pltpu.CompilerParams(
            dimension_semantics=("parallel",),
            vmem_limit_bytes=vmem_limit,
        ),
        cost_estimate=cost,
    )(x, w1, b1, w2, b2)

    return out


def _reference(inputs, params):
    nearest_neibours, _ = inputs
    w1, b1, w2, b2 = params
    h = jnp.tanh(nearest_neibours @ w1 + b1.reshape(1, -1))
    return h @ w2 + b2.reshape(1, -1)


if __name__ == "__main__":
    key = jax.random.PRNGKey(0)
    k_x, k_na, k_w1, k_b1, k_w2, k_b2 = jax.random.split(key, 6)

    B, D, H, OUT = 8, 16, 32, 8  # small, TPU-friendly shapes

    nearest_neibours = jax.random.normal(k_x, (B, D), dtype=jnp.float32)
    Na_data = jax.random.normal(k_na, (B,), dtype=jnp.float32)  # passed through, unused

    # Deterministic parameter init (PyTorch-Linear-like uniform scaling).
    w1 = jax.random.uniform(k_w1, (D, H), jnp.float32, -1.0, 1.0) / jnp.sqrt(D)
    b1 = jax.random.uniform(k_b1, (1, H), jnp.float32, -1.0, 1.0) / jnp.sqrt(D)
    w2 = jax.random.uniform(k_w2, (H, OUT), jnp.float32, -1.0, 1.0) / jnp.sqrt(H)
    b2 = jax.random.uniform(k_b2, (1, OUT), jnp.float32, -1.0, 1.0) / jnp.sqrt(H)
    params = (w1, b1, w2, b2)

    result = multi_nn_1layer_net((nearest_neibours, Na_data), params)
    result = jax.block_until_ready(result)

    ref = _reference((nearest_neibours, Na_data), params)
    assert result.shape == (B, OUT)
    assert jnp.allclose(result, ref, atol=1e-5, rtol=1e-5)

    print("KERNEL_OK")
</pallas_src>

<mosaic_0001>
module attributes {stable_mosaic.version = 11 : i64} {
  func.func @_mlp2_kernel(%arg0: i32, %arg1: memref<8x16xf32, #tpu.memory_space<vmem>>, %arg2: memref<16x32xf32, #tpu.memory_space<vmem>>, %arg3: memref<1x32xf32, #tpu.memory_space<vmem>>, %arg4: memref<32x8xf32, #tpu.memory_space<vmem>>, %arg5: memref<1x8xf32, #tpu.memory_space<vmem>>, %arg6: memref<8x8xf32, #tpu.memory_space<vmem>>) attributes {dimension_semantics = [#tpu.dimension_semantics<parallel>], iteration_bounds = array<i64: 1>, scalar_prefetch = 0 : i64, scratch_operands = 0 : i64, tpu.core_type = #tpu.core_type<tc>, window_params = [{transform_indices = @transform_0, window_bounds = array<i64: 8, 16>}, {pipeline_mode = #tpu.pipeline_mode<synchronous>, transform_indices = @transform_1, window_bounds = array<i64: 16, 32>}, {pipeline_mode = #tpu.pipeline_mode<synchronous>, transform_indices = @transform_2, window_bounds = array<i64: 1, 32>}, {pipeline_mode = #tpu.pipeline_mode<synchronous>, transform_indices = @transform_3, window_bounds = array<i64: 32, 8>}, {pipeline_mode = #tpu.pipeline_mode<synchronous>, transform_indices = @transform_4, window_bounds = array<i64: 1, 8>}, {transform_indices = @transform_5, window_bounds = array<i64: 8, 8>}]} {
    %c0 = arith.constant 0 : index
    %c0_0 = arith.constant 0 : index
    %0 = vector.load %arg1[%c0, %c0_0] : memref<8x16xf32, #tpu.memory_space<vmem>>, vector<8x16xf32>
    %c0_1 = arith.constant 0 : index
    %c0_2 = arith.constant 0 : index
    %1 = vector.load %arg2[%c0_1, %c0_2] : memref<16x32xf32, #tpu.memory_space<vmem>>, vector<16x32xf32>
    %cst = arith.constant dense<0.000000e+00> : vector<8x32xf32>
    %2 = tpu.matmul %0, %1, %cst {dimension_numbers = #tpu.dot_dimension_numbers<[1], [0], [0], [1], [0, 0, 1, 1], [], []>} : vector<8x16xf32>, vector<16x32xf32>, vector<8x32xf32> -> vector<8x32xf32>
    %c0_3 = arith.constant 0 : index
    %c0_4 = arith.constant 0 : index
    %3 = vector.load %arg3[%c0_3, %c0_4] : memref<1x32xf32, #tpu.memory_space<vmem>>, vector<1x32xf32>
    %4 = vector.broadcast %3 : vector<1x32xf32> to vector<8x32xf32>
    %5 = arith.addf %2, %4 : vector<8x32xf32>
    %6 = math.tanh %5 : vector<8x32xf32>
    %c0_5 = arith.constant 0 : index
    %c0_6 = arith.constant 0 : index
    %7 = vector.load %arg4[%c0_5, %c0_6] : memref<32x8xf32, #tpu.memory_space<vmem>>, vector<32x8xf32>
    %cst_7 = arith.constant dense<0.000000e+00> : vector<8x8xf32>
    %8 = tpu.matmul %6, %7, %cst_7 {dimension_numbers = #tpu.dot_dimension_numbers<[1], [0], [0], [1], [0, 0, 1, 1], [], []>} : vector<8x32xf32>, vector<32x8xf32>, vector<8x8xf32> -> vector<8x8xf32>
    %c0_8 = arith.constant 0 : index
    %c0_9 = arith.constant 0 : index
    %9 = vector.load %arg5[%c0_8, %c0_9] : memref<1x8xf32, #tpu.memory_space<vmem>>, vector<1x8xf32>
    %10 = vector.broadcast %9 : vector<1x8xf32> to vector<8x8xf32>
    %11 = arith.addf %8, %10 : vector<8x8xf32>
    %c0_10 = arith.constant 0 : index
    %c0_11 = arith.constant 0 : index
    %12 = vector.load %arg6[%c0_10, %c0_11] : memref<8x8xf32, #tpu.memory_space<vmem>>, vector<8x8xf32>
    tpu.vector_store %arg6[%c0_10, %c0_11], %11 {strides = array<i32>} : memref<8x8xf32, #tpu.memory_space<vmem>>, vector<8x8xf32>,
    return
  }
  func.func @transform_0(%arg0: i32) -> (i32, i32) {
    %c0_i32 = arith.constant 0 : i32
    %c0_i32_0 = arith.constant 0 : i32
    return %arg0, %c0_i32 : i32, i32
  }
  func.func @transform_1(%arg0: i32) -> (i32, i32) {
    %c0_i32 = arith.constant 0 : i32
    %c0_i32_0 = arith.constant 0 : i32
    %c0_i32_1 = arith.constant 0 : i32
    return %c0_i32, %c0_i32_0 : i32, i32
  }
  func.func @transform_2(%arg0: i32) -> (i32, i32) {
    %c0_i32 = arith.constant 0 : i32
    %c0_i32_0 = arith.constant 0 : i32
    %c0_i32_1 = arith.constant 0 : i32
    return %c0_i32, %c0_i32_0 : i32, i32
  }
  func.func @transform_3(%arg0: i32) -> (i32, i32) {
    %c0_i32 = arith.constant 0 : i32
    %c0_i32_0 = arith.constant 0 : i32
    %c0_i32_1 = arith.constant 0 : i32
    return %c0_i32, %c0_i32_0 : i32, i32
  }
  func.func @transform_4(%arg0: i32) -> (i32, i32) {
    %c0_i32 = arith.constant 0 : i32
    %c0_i32_0 = arith.constant 0 : i32
    %c0_i32_1 = arith.constant 0 : i32
    return %c0_i32, %c0_i32_0 : i32, i32
  }
  func.func @transform_5(%arg0: i32) -> (i32, i32) {
    %c0_i32 = arith.constant 0 : i32
    %c0_i32_0 = arith.constant 0 : i32
    return %arg0, %c0_i32 : i32, i32
  }
}

</mosaic_0001>

<llo_original>
// kernel: tpu_custom_call.1
$region0: #{tpu_custom_call.1}
  #allocation0 [shape = 'u32[]', space=smem, size = 0x4, offset = 0x4, fixed_abs, tag = 'smem constant byte address 0x4 - core index']
  #allocation1 [shape = 'u32[72,128]{1,0:T(1,128)}', space=vmem, size = 0x9000, scoped, tag = 'internal scratch']
  %s0 = inlined_call_operand.vmem [shape: f32[8,16], index: 0, kind: input, shape index: {}]
  %s1 = inlined_call_operand.vmem [shape: f32[16,32], index: 1, kind: input, shape index: {}]
  %s2 = inlined_call_operand.vmem [shape: f32[1,32], index: 2, kind: input, shape index: {}]
  %s3 = inlined_call_operand.vmem [shape: f32[32,8], index: 3, kind: input, shape index: {}]
  %s4 = inlined_call_operand.vmem [shape: f32[1,8], index: 4, kind: input, shape index: {}]
  %s5 = inlined_call_operand.hbm [shape: f32[8,8], index: 5, kind: output, shape index: {}]
  %s6 = sld [smem:[#allocation0]]
  $region30: #{tpu_custom_call.1} parent=0
    _
  %s8 = ssub.s32 1, %s6
  %s9 = scalar_select 0, %s8, %s6
  $region1: #{tpu_custom_call.1} parent=0
    #allocation2 [shape = 'u8[4096]{0}', space=vmem, size = 0x1000, scoped, tag = 'output window, operand 0, single buffered']
    #allocation3 [shape = 's32[1]{0}', space=sflag, size = 0x4, scoped, tag = 'scoped memory for tpu_custom_call.1']
    %10 = vsyncpa [#allocation3], 0
    // Predicated region
    $region2: #{tpu_custom_call.1} parent=1 // pred_check
      _
    $region3: #{tpu_custom_call.1} parent=1 // pred_check_branch
      %12 = sbr.rel (0) target = $region5
    $region4: #{tpu_custom_call.1} parent=1 // pred_region
      _
    $region5: #{tpu_custom_call.1} parent=1 // pred_fallthru
      _
    // Predicated region
    $region6: #{tpu_custom_call.1} parent=1 // pred_check
      _
    $region7: #{tpu_custom_call.1} parent=1 // pred_check_branch
      %14 = sbr.rel (0) target = $region9
    $region8: #{tpu_custom_call.1} parent=1 // pred_region
      _
    $region9: #{tpu_custom_call.1} parent=1 // pred_fallthru
      _
    // Predicated region
    $region10: #{tpu_custom_call.1} parent=1 // pred_check
      _
    $region11: #{tpu_custom_call.1} parent=1 // pred_check_branch
      %16 = sbr.rel (0) target = $region13
    $region12: #{tpu_custom_call.1} parent=1 // pred_region
      _
    $region13: #{tpu_custom_call.1} parent=1 // pred_fallthru
      _
    // Predicated region
    $region14: #{tpu_custom_call.1} parent=1 // pred_check
      _
    $region15: #{tpu_custom_call.1} parent=1 // pred_check_branch
      %18 = sbr.rel (0) target = $region17
    $region16: #{tpu_custom_call.1} parent=1 // pred_region
      _
    $region17: #{tpu_custom_call.1} parent=1 // pred_fallthru
      _
    // Predicated region
    $region18: #{tpu_custom_call.1} parent=1 // pred_check
      _
    $region19: #{tpu_custom_call.1} parent=1 // pred_check_branch
      %20 = sbr.rel (0) target = $region21
    $region20: #{tpu_custom_call.1} parent=1 // pred_region
      _
    $region21: #{tpu_custom_call.1} parent=1 // pred_fallthru
      _
    %v21 = vld [vmem:[%s0] sm:$0xff]
    %v22 = vld [vmem:[%s1] sm:$0xff]
    %v23 = vld [vmem:[%s1 + $0x8] sm:$0xff]
    %v24 = vld [vmem:[%s2] sm:$0x1]
    %v26 = vperm.slane %v24, 0
    %vm28 = vcmask 130048
    %v30 = vsel %vm28, %v21, 0
    %32 = vmatpush.msra.mxu0 0.0
    %33 = vmatpush.msra.mxu0 0.0
    %34 = vmatpush.msra.mxu0 0.0
    %35 = vmatpush.msra.mxu0 0.0
    %36 = vmatpush.msra.mxu0 0.0
    %37 = vmatpush.msra.mxu0 0.0
    %38 = vmatpush.msra.mxu0 0.0
    %39 = vmatpush.msra.mxu0 0.0
    %40 = vmatpush.msra.mxu0 0.0
    %41 = vmatpush.msra.mxu0 0.0
    %42 = vmatpush.msra.mxu0 0.0
    %43 = vmatpush.msra.mxu0 0.0
    %44 = vmatpush.msra.mxu0 0.0
    %45 = vmatpush.msra.mxu0 0.0
    %46 = vmatpush.msra.mxu0 %v23
    %47 = vmatpush.msra.mxu0 %v22
    %48 = vmatmul.f32.gmra.mxu0 %v30
    %v49 = vpop.f32.mrf.mxu0
    %v50 = vadd.f32 %v26, %v49
    %51 = vdwg.mxu0
    %v52 = vtanh.pop %v50
    %v53 = vld [vmem:[%s3] sm:$0xff]
    %v54 = vld [vmem:[%s3 + $0x8] sm:$0xff]
    %v55 = vld [vmem:[%s3 + $0x10] sm:$0xff]
    %v56 = vld [vmem:[%s3 + $0x18] sm:$0xff]
    %v57 = vld [vmem:[%s4] sm:$0x1]
    %v59 = vperm.slane %v57, 0
    %vm61 = vcmask 261120
    %v63 = vsel %vm61, %v52, 0
    %65 = vmatpush.msra.mxu0 0.0
    %66 = vmatpush.msra.mxu0 0.0
    %67 = vmatpush.msra.mxu0 0.0
    %68 = vmatpush.msra.mxu0 0.0
    %69 = vmatpush.msra.mxu0 0.0
    %70 = vmatpush.msra.mxu0 0.0
    %71 = vmatpush.msra.mxu0 0.0
    %72 = vmatpush.msra.mxu0 0.0
    %73 = vmatpush.msra.mxu0 0.0
    %74 = vmatpush.msra.mxu0 0.0
    %75 = vmatpush.msra.mxu0 0.0
    %76 = vmatpush.msra.mxu0 0.0
    %77 = vmatpush.msra.mxu0 %v56
    %78 = vmatpush.msra.mxu0 %v55
    %79 = vmatpush.msra.mxu0 %v54
    %80 = vmatpush.msra.mxu0 %v53
    %81 = vmatmul.f32.gmra.mxu0 %v63
    %v82 = vpop.f32.mrf.mxu0
    %v83 = vadd.f32 %v59, %v82
    %84 = vdwg.mxu0
    %vm85 = vcmask 64512
    %86 = vst.msk [vmem:[#allocation2] sm:$0xff] %vm85, %v83
    // Predicated region
    $region22: #{tpu_custom_call.1} parent=1 // pred_check
      _
    $region23: #{tpu_custom_call.1} parent=1 // pred_check_branch
      %88 = sbr.rel (0) target = $region25
    $region24: #{tpu_custom_call.1} parent=1 // pred_region
      %90 = vsyncadd [#allocation3], 0
      %s92 = sshll.u32 [#allocation2], 4
      %s93 = int_to_ptr.vmem [resolvable:$true] %s92
      %s94 = sshll.u32 %s5, 4
      %s95 = int_to_ptr.hbm [resolvable:$true] %s94
      %97 = dma.vmem_to_hbm [thread:$0]  %s93, 128, %s95, [#allocation3]
    $region25: #{tpu_custom_call.1} parent=1 // pred_fallthru
      _
    // Predicated region
    $region26: #{tpu_custom_call.1} parent=1 // pred_check
      _
    $region27: #{tpu_custom_call.1} parent=1 // pred_check_branch
      %99 = sbr.rel (0) target = $region29
    $region28: #{tpu_custom_call.1} parent=1 // pred_region
      %101 = dma.done [#allocation3], 128
    $region29: #{tpu_custom_call.1} parent=1 // pred_fallthru
      _
    %102 = vsyncpa [#allocation3], 1

</llo_original>
